<compile_context>
chip_gen: v6e
topology: v6e:2x2x1
jax: 0.10.0
libtpu: 0.0.40
codegen_flags: <defaults>
</compile_context>

<pallas_src>
import functools

import jax
import jax.numpy as jnp
import numpy as np
from jax import lax
from jax.experimental import pallas as pl
from jax.experimental.pallas import tpu as pltpu

HIDDEN = 128
LANE = 128
SUBLANE = 8


def _round_up(n, m):
    return ((n + m - 1) // m) * m


def discriminator_kernel(x_ref, w1_ref, b1_ref, w2_ref, b2_ref, o_ref):
    # Hidden layer: cast activations to bf16 in-kernel (no wrapper copy) and run
    # [TB, D](bf16) @ [D, 128](bf16) -> f32 accumulate on the MXU.
    x = x_ref[...].astype(jnp.bfloat16)
    h = jnp.dot(x, w1_ref[...], preferred_element_type=jnp.float32)
    h = jnp.maximum(h + b1_ref[...], 0.0)                      # bias + ReLU (f32, VPU)

    # Output layer: contract the 128-wide hidden dim of w2_row [1,128] against
    # h [TB,128] -> lane-dense [1, TB] on the MXU, then add the scalar bias.
    z = lax.dot_general(
        w2_ref[...], h,
        dimension_numbers=(((1,), (1,)), ((), ())),
        preferred_element_type=jnp.float32,
    ) + b2_ref[0, 0]

    # Sigmoid: exp and approximate reciprocal both go to the EUP slot.
    o_ref[...] = pl.reciprocal(1.0 + jnp.exp(-z), approx=True).astype(o_ref.dtype)


@functools.partial(jax.jit, static_argnames=("block_b",))
def discriminator_forward(x, w1, b1, w2, b2, *, block_b=1024):
    """x: [B, D] f32; w1: [D, 128]; b1: [128] or [1,128]; w2: [128, 1]; b2: [1] or [1,1]."""
    B, D = x.shape
    assert block_b % LANE == 0, "block_b must be a multiple of 128"

    # Batch-tile choice.  >1 grid step => tile is a multiple of 128 so the
    # [1, TB] output blocks stay lane-aligned; medium batches are split in two
    # so v7x's second TensorCore has work (no-op on v5e/v6e, 1 TC per chip).
    if B > block_b:
        tb = block_b
    elif B >= 2 * LANE:
        tb = _round_up(-(-B // 2), LANE)      # ceil(B/2) rounded up to 128
    else:
        tb = _round_up(B, SUBLANE)            # single tile == (padded) batch

    nb = -(-B // tb)                          # number of batch tiles (grid size)
    b_pad = nb * tb

    # Small, one-time weight prep (no copies of x!).
    w1_bf = w1.astype(jnp.bfloat16)                        # [D, 128]
    b1_row = b1.reshape(1, HIDDEN).astype(jnp.float32)     # [1, 128]
    w2_row = w2.reshape(1, HIDDEN).astype(jnp.float32)     # column of w2 as a row
    b2_s = b2.reshape(1, 1).astype(jnp.float32)            # SMEM scalar

    # VMEM budget: double-buffered x tile + resident weights + intermediates,
    # with headroom; clamped to 64 MiB so the request is also valid on v7x.
    vmem_est = 2 * (2 * tb * D * 4 + 2 * D * HIDDEN * 2 + 4 * tb * HIDDEN * 4) + (2 << 20)
    vmem_limit = int(min(max(vmem_est, 16 << 20), 64 << 20))

    cost = pl.CostEstimate(
        flops=2 * B * D * HIDDEN + 2 * B * HIDDEN,
        transcendentals=2 * B,                                # exp + reciprocal per row
        bytes_accessed=B * D * 4 + D * HIDDEN * 2 + 2 * HIDDEN * 4 + b_pad * 4,
    )

    out = pl.pallas_call(
        discriminator_kernel,
        out_shape=jax.ShapeDtypeStruct((1, b_pad), jnp.float32),
        grid=(nb,),
        in_specs=[
            # x: tiled over the batch grid axis; last dim is the full D (no pad copy).
            pl.BlockSpec((tb, D), lambda i: (i, 0)),
            # Weights / biases: constant index_map -> DMA'd once, VMEM-resident.
            pl.BlockSpec((D, HIDDEN), lambda i: (0, 0)),
            pl.BlockSpec((1, HIDDEN), lambda i: (0, 0)),
            pl.BlockSpec((1, HIDDEN), lambda i: (0, 0)),
            # Scalar output bias lives in SMEM.
            pl.BlockSpec((1, 1), lambda i: (0, 0), memory_space=pltpu.MemorySpace.SMEM),
        ],
        # Lane-dense output: each grid step writes one [1, TB] row segment.
        out_specs=pl.BlockSpec((1, tb), lambda i: (0, i)),
        compiler_params=pltpu.CompilerParams(
            dimension_semantics=("parallel",),   # shard batch tiles across TCs on v7x
            vmem_limit_bytes=vmem_limit,
        ),
        cost_estimate=cost,
    )(x, w1_bf, b1_row, w2_row, b2_s)

    # Undo the lane-dense layout; padded tail entries (unspecified) are dropped.
    return out[0, :B].reshape(B, 1)


def init_params(key, input_dim):
    """Deterministic init mimicking nn.Linear (uniform in +-1/sqrt(fan_in))."""
    k1, k2, k3, k4 = jax.random.split(key, 4)
    lim1 = 1.0 / np.sqrt(input_dim)
    lim2 = 1.0 / np.sqrt(HIDDEN)
    # Stored already transposed: [in, out]
    w1 = jax.random.uniform(k1, (input_dim, HIDDEN), jnp.float32, -lim1, lim1)
    b1 = jax.random.uniform(k2, (1, HIDDEN), jnp.float32, -lim1, lim1)
    w2 = jax.random.uniform(k3, (HIDDEN, 1), jnp.float32, -lim2, lim2)
    b2 = jax.random.uniform(k4, (1, 1), jnp.float32, -lim2, lim2)
    return w1, b1, w2, b2


if __name__ == "__main__":
    key = jax.random.PRNGKey(0)
    kx, kp = jax.random.split(key)

    B, INPUT_DIM = 8, 32
    x = jax.random.normal(kx, (B, INPUT_DIM), jnp.float32)
    w1, b1, w2, b2 = init_params(kp, INPUT_DIM)

    out = discriminator_forward(x, w1, b1, w2, b2)
    out = jax.block_until_ready(out)

    # Pure-JAX f32 reference (PyTorch semantics).  Tolerance loosened because
    # the kernel runs the first matmul in bf16 and uses an approximate EUP
    # reciprocal in the sigmoid (fine for a GAN discriminator).
    h_ref = jnp.maximum(x @ w1 + b1, 0.0)
    ref = jax.nn.sigmoid(h_ref @ w2 + b2)
    np.testing.assert_allclose(np.asarray(out), np.asarray(ref), rtol=2e-2, atol=2e-2)

    assert out.shape == (B, 1)
    print("KERNEL_OK")
</pallas_src>

<mosaic_0001>
module attributes {stable_mosaic.version = 11 : i64} {
  func.func @discriminator_kernel(%arg0: i32, %arg1: memref<8x32xf32, #tpu.memory_space<vmem>>, %arg2: memref<32x128xbf16, #tpu.memory_space<vmem>>, %arg3: memref<1x128xf32, #tpu.memory_space<vmem>>, %arg4: memref<1x128xf32, #tpu.memory_space<vmem>>, %arg5: memref<1x1xf32, #tpu.memory_space<smem>>, %arg6: memref<1x8xf32, #tpu.memory_space<vmem>>) attributes {dimension_semantics = [#tpu.dimension_semantics<parallel>], iteration_bounds = array<i64: 1>, scalar_prefetch = 0 : i64, scratch_operands = 0 : i64, tpu.core_type = #tpu.core_type<tc>, window_params = [{transform_indices = @transform_0, window_bounds = array<i64: 8, 32>}, {pipeline_mode = #tpu.pipeline_mode<synchronous>, transform_indices = @transform_1, window_bounds = array<i64: 32, 128>}, {pipeline_mode = #tpu.pipeline_mode<synchronous>, transform_indices = @transform_2, window_bounds = array<i64: 1, 128>}, {pipeline_mode = #tpu.pipeline_mode<synchronous>, transform_indices = @transform_3, window_bounds = array<i64: 1, 128>}, {transform_indices = @transform_4, window_bounds = array<i64: 1, 1>}, {transform_indices = @transform_5, window_bounds = array<i64: 1, 8>}]} {
    %c0 = arith.constant 0 : index
    %c0_0 = arith.constant 0 : index
    %0 = vector.load %arg1[%c0, %c0_0] : memref<8x32xf32, #tpu.memory_space<vmem>>, vector<8x32xf32>
    %1 = arith.truncf %0 : vector<8x32xf32> to vector<8x32xbf16>
    %c0_1 = arith.constant 0 : index
    %c0_2 = arith.constant 0 : index
    %2 = vector.load %arg2[%c0_1, %c0_2] : memref<32x128xbf16, #tpu.memory_space<vmem>>, vector<32x128xbf16>
    %cst = arith.constant dense<0.000000e+00> : vector<8x128xf32>
    %3 = tpu.matmul %1, %2, %cst {dimension_numbers = #tpu.dot_dimension_numbers<[1], [0], [0], [1], [0, 0, 1, 1], [], []>} : vector<8x32xbf16>, vector<32x128xbf16>, vector<8x128xf32> -> vector<8x128xf32>
    %c0_3 = arith.constant 0 : index
    %c0_4 = arith.constant 0 : index
    %4 = vector.load %arg3[%c0_3, %c0_4] : memref<1x128xf32, #tpu.memory_space<vmem>>, vector<1x128xf32>
    %5 = vector.broadcast %4 : vector<1x128xf32> to vector<8x128xf32>
    %6 = arith.addf %3, %5 : vector<8x128xf32>
    %cst_5 = arith.constant 0.000000e+00 : f32
    %7 = vector.broadcast %cst_5 : f32 to vector<8x128xf32>
    %8 = arith.maximumf %6, %7 : vector<8x128xf32>
    %c0_6 = arith.constant 0 : index
    %c0_7 = arith.constant 0 : index
    %9 = vector.load %arg4[%c0_6, %c0_7] : memref<1x128xf32, #tpu.memory_space<vmem>>, vector<1x128xf32>
    %cst_8 = arith.constant dense<0.000000e+00> : vector<1x8xf32>
    %10 = tpu.matmul %9, %8, %cst_8 {dimension_numbers = #tpu.dot_dimension_numbers<[1], [1], [0], [0], [0, 0, 1, 0], [], []>} : vector<1x128xf32>, vector<8x128xf32>, vector<1x8xf32> -> vector<1x8xf32>
    %c0_9 = arith.constant 0 : index
    %c0_10 = arith.constant 0 : index
    %11 = memref.load %arg5[%c0_9, %c0_10] : memref<1x1xf32, #tpu.memory_space<smem>>
    %12 = vector.broadcast %11 : f32 to vector<1x8xf32>
    %13 = arith.addf %10, %12 : vector<1x8xf32>
    %cst_11 = arith.constant 0.000000e+00 : f32
    %14 = vector.broadcast %cst_11 : f32 to vector<1x8xf32>
    %15 = arith.subf %14, %13 : vector<1x8xf32>
    %16 = math.exp %15 : vector<1x8xf32>
    %cst_12 = arith.constant 1.000000e+00 : f32
    %17 = vector.broadcast %cst_12 : f32 to vector<1x8xf32>
    %18 = arith.addf %17, %16 : vector<1x8xf32>
    %19 = tpu.reciprocal %18 {approx = true} : vector<1x8xf32> -> vector<1x8xf32>
    %c0_13 = arith.constant 0 : index
    %c0_14 = arith.constant 0 : index
    %20 = vector.load %arg6[%c0_13, %c0_14] : memref<1x8xf32, #tpu.memory_space<vmem>>, vector<1x8xf32>
    tpu.vector_store %arg6[%c0_13, %c0_14], %19 {strides = array<i32>} : memref<1x8xf32, #tpu.memory_space<vmem>>, vector<1x8xf32>,
    return
  }
  func.func @transform_0(%arg0: i32) -> (i32, i32) {
    %c0_i32 = arith.constant 0 : i32
    %c0_i32_0 = arith.constant 0 : i32
    return %arg0, %c0_i32 : i32, i32
  }
  func.func @transform_1(%arg0: i32) -> (i32, i32) {
    %c0_i32 = arith.constant 0 : i32
    %c0_i32_0 = arith.constant 0 : i32
    %c0_i32_1 = arith.constant 0 : i32
    return %c0_i32, %c0_i32_0 : i32, i32
  }
  func.func @transform_2(%arg0: i32) -> (i32, i32) {
    %c0_i32 = arith.constant 0 : i32
    %c0_i32_0 = arith.constant 0 : i32
    %c0_i32_1 = arith.constant 0 : i32
    return %c0_i32, %c0_i32_0 : i32, i32
  }
  func.func @transform_3(%arg0: i32) -> (i32, i32) {
    %c0_i32 = arith.constant 0 : i32
    %c0_i32_0 = arith.constant 0 : i32
    %c0_i32_1 = arith.constant 0 : i32
    return %c0_i32, %c0_i32_0 : i32, i32
  }
  func.func @transform_4(%arg0: i32) -> (i32, i32) {
    %c0_i32 = arith.constant 0 : i32
    %c0_i32_0 = arith.constant 0 : i32
    %c0_i32_1 = arith.constant 0 : i32
    return %c0_i32, %c0_i32_0 : i32, i32
  }
  func.func @transform_5(%arg0: i32) -> (i32, i32) {
    %c0_i32 = arith.constant 0 : i32
    %c0_i32_0 = arith.constant 0 : i32
    return %c0_i32, %arg0 : i32, i32
  }
}

</mosaic_0001>

<llo_original>
// kernel: discriminator_forward.1
$region0: #{discriminator_forward.1}
  #allocation0 [shape = 'u32[]', space=smem, size = 0x4, offset = 0x4, fixed_abs, tag = 'smem constant byte address 0x4 - core index']
  #allocation1 [shape = 'u32[144,128]{1,0:T(1,128)}', space=vmem, size = 0x12000, scoped, tag = 'internal scratch']
  #allocation2 [shape = 'f32[1,1]{1,0:T(1,128)S(6)}', space=smem, size = 0x200, scoped, tag = 'scoped memory for discriminator_forward.1']
  %s0 = inlined_call_operand.vmem [shape: f32[8,32], index: 0, kind: input, shape index: {}]
  %s1 = inlined_call_operand.vmem [shape: bf16[32,128], index: 1, kind: input, shape index: {}]
  %s2 = inlined_call_operand.vmem [shape: f32[1,128], index: 2, kind: input, shape index: {}]
  %s3 = inlined_call_operand.vmem [shape: f32[1,128], index: 3, kind: input, shape index: {}]
  %s4 = inlined_call_operand.<no memory space> [shape: f32[1,1], index: 4, kind: input, shape index: {}]
  %s5 = inlined_call_operand.hbm [shape: f32[1,8], index: 5, kind: output, shape index: {}]
  %s6 = sld [smem:[#allocation0]]
  $region30: #{discriminator_forward.1} parent=0
    _
  %s8 = ssub.s32 1, %s6
  %s9 = scalar_select 0, %s8, %s6
  %10 = sst [smem:[#allocation2]] %s4
  $region1: #{discriminator_forward.1} parent=0
    #allocation3 [shape = 'u8[512]{0}', space=vmem, size = 0x400, scoped, tag = 'output window, operand 0, single buffered']
    #allocation4 [shape = 's32[1]{0}', space=sflag, size = 0x4, scoped, tag = 'scoped memory for discriminator_forward.1']
    %11 = vsyncpa [#allocation4], 0
    // Predicated region
    $region2: #{discriminator_forward.1} parent=1 // pred_check
      _
    $region3: #{discriminator_forward.1} parent=1 // pred_check_branch
      %13 = sbr.rel (0) target = $region5
    $region4: #{discriminator_forward.1} parent=1 // pred_region
      _
    $region5: #{discriminator_forward.1} parent=1 // pred_fallthru
      _
    // Predicated region
    $region6: #{discriminator_forward.1} parent=1 // pred_check
      _
    $region7: #{discriminator_forward.1} parent=1 // pred_check_branch
      %15 = sbr.rel (0) target = $region9
    $region8: #{discriminator_forward.1} parent=1 // pred_region
      _
    $region9: #{discriminator_forward.1} parent=1 // pred_fallthru
      _
    // Predicated region
    $region10: #{discriminator_forward.1} parent=1 // pred_check
      _
    $region11: #{discriminator_forward.1} parent=1 // pred_check_branch
      %17 = sbr.rel (0) target = $region13
    $region12: #{discriminator_forward.1} parent=1 // pred_region
      _
    $region13: #{discriminator_forward.1} parent=1 // pred_fallthru
      _
    // Predicated region
    $region14: #{discriminator_forward.1} parent=1 // pred_check
      _
    $region15: #{discriminator_forward.1} parent=1 // pred_check_branch
      %19 = sbr.rel (0) target = $region17
    $region16: #{discriminator_forward.1} parent=1 // pred_region
      _
    $region17: #{discriminator_forward.1} parent=1 // pred_fallthru
      _
    // Predicated region
    $region18: #{discriminator_forward.1} parent=1 // pred_check
      _
    $region19: #{discriminator_forward.1} parent=1 // pred_check_branch
      %21 = sbr.rel (0) target = $region21
    $region20: #{discriminator_forward.1} parent=1 // pred_region
      _
    $region21: #{discriminator_forward.1} parent=1 // pred_fallthru
      _
    %v23 = vld [vmem:[%s0] sm:$0xff]
    %v24 = vpack.c.bf16 %v23, %v23
    %v25 = vld [vmem:[%s1] sm:$0xf]
    %v26 = vld [vmem:[%s1 + $0x4] sm:$0xf]
    %v27 = vld [vmem:[%s1 + $0x8] sm:$0xf]
    %v28 = vld [vmem:[%s1 + $0xc] sm:$0xf]
    %v29 = vld [vmem:[%s2] sm:$0x1]
    %v31 = vlaneseq
    %v32 = vshrl.u32 %v31, 7
    %v33 = vsub.s32 0, %v32
    %v34 = vrot.slane %v29, %v33
    %v40 = vunpack.c.l.b16 %v25
    %v41 = vunpack.c.l.b16 %v26
    %v42 = vunpack.c.l.b16 %v27
    %v43 = vunpack.c.l.b16 %v28
    %v44 = vpack.c.b16 %v41, %v40
    %v45 = vpack.c.b16 %v43, %v42
    %vm48 = vcmask 261120
    %v50 = vsel %vm48, %v24, 0
    %52 = vmatprep.subr.bf16.mxu0 0
    %53 = vmatpush1.bf16.msra.mxu0 0
    %54 = vmatprep.subr.bf16.mxu0 0
    %55 = vmatpush1.bf16.msra.mxu0 0
    %56 = vmatprep.subr.bf16.mxu0 0
    %57 = vmatpush1.bf16.msra.mxu0 0
    %58 = vmatprep.subr.bf16.mxu0 0
    %59 = vmatpush1.bf16.msra.mxu0 0
    %60 = vmatprep.subr.bf16.mxu0 0
    %61 = vmatpush1.bf16.msra.mxu0 0
    %62 = vmatprep.subr.bf16.mxu0 0
    %63 = vmatpush1.bf16.msra.mxu0 0
    %64 = vmatprep.subr.bf16.mxu0 0
    %65 = vmatpush1.bf16.msra.mxu0 %v45
    %66 = vmatprep.subr.bf16.mxu0 0
    %67 = vmatpush1.bf16.msra.mxu0 %v44
    %68 = vmatprep.subr.bf16.mxu0 0
    %69 = vmatpush2.bf16.msra.mxu0 0
    %70 = vmatprep.subr.bf16.mxu0 0
    %71 = vmatpush2.bf16.msra.mxu0 0
    %72 = vmatprep.subr.bf16.mxu0 0
    %73 = vmatpush2.bf16.msra.mxu0 0
    %74 = vmatprep.subr.bf16.mxu0 0
    %75 = vmatpush2.bf16.msra.mxu0 0
    %76 = vmatprep.subr.bf16.mxu0 0
    %77 = vmatpush2.bf16.msra.mxu0 0
    %78 = vmatprep.subr.bf16.mxu0 0
    %79 = vmatpush2.bf16.msra.mxu0 0
    %80 = vmatprep.subr.bf16.mxu0 0
    %81 = vmatpush2.bf16.msra.mxu0 0
    %82 = vmatprep.subr.bf16.mxu0 0
    %83 = vmatpush2.bf16.msra.mxu0 0
    %84 = vmatprep.mubr.bf16.mxu0 0
    %85 = vmatmul.mubr.bf16.gmra.mxu0 %v50
    %v86 = vpop.f32.mrf.mxu0
    %v87 = vadd.f32 %v34, %v86
    %v88 = vpop.f32.mrf.mxu0
    %v89 = vpop.f32.mrf.mxu0
    %v90 = vpop.f32.mrf.mxu0
    %91 = vdwg.mxu0
    %v92 = vmax.f32 %v87, 0.0
    %v93 = vld [vmem:[%s3] sm:$0x1]
    %s94 = sld [smem:[#allocation2]]
    %v95 = vstv %s94
    %96 = vmatprep.subr.mxu0 0.0
    %97 = vmatpush1.xpose.msra.mxu0 0.0
    %98 = vmatprep.subr.mxu0 0.0
    %99 = vmatpush1.xpose.msra.mxu0 0.0
    %100 = vmatprep.subr.mxu0 0.0
    %101 = vmatpush1.xpose.msra.mxu0 0.0
    %102 = vmatprep.subr.mxu0 0.0
    %103 = vmatpush1.xpose.msra.mxu0 0.0
    %104 = vmatprep.subr.mxu0 0.0
    %105 = vmatpush1.xpose.msra.mxu0 0.0
    %106 = vmatprep.subr.mxu0 0.0
    %107 = vmatpush1.xpose.msra.mxu0 0.0
    %108 = vmatprep.subr.mxu0 0.0
    %109 = vmatpush1.xpose.msra.mxu0 0.0
    %110 = vmatprep.subr.mxu0 0.0
    %111 = vmatpush1.xpose.msra.mxu0 0.0
    %112 = vmatprep.subr.mxu0 0.0
    %113 = vmatpush1.xpose.msra.mxu0 0.0
    %114 = vmatprep.subr.mxu0 0.0
    %115 = vmatpush1.xpose.msra.mxu0 0.0
    %116 = vmatprep.subr.mxu0 0.0
    %117 = vmatpush1.xpose.msra.mxu0 0.0
    %118 = vmatprep.subr.mxu0 0.0
    %119 = vmatpush1.xpose.msra.mxu0 0.0
    %120 = vmatprep.subr.mxu0 0.0
    %121 = vmatpush1.xpose.msra.mxu0 0.0
    %122 = vmatprep.subr.mxu0 0.0
    %123 = vmatpush1.xpose.msra.mxu0 0.0
    %124 = vmatprep.subr.mxu0 0.0
    %125 = vmatpush1.xpose.msra.mxu0 0.0
    %126 = vmatprep.subr.mxu0 0.0
    %127 = vmatpush1.xpose.msra.mxu0 %v92
    %128 = vmatprep.subr.mxu0 0.0
    %129 = vmatpush2.xpose.msra.mxu0 0.0
    %130 = vmatprep.subr.mxu0 0.0
    %131 = vmatpush2.xpose.msra.mxu0 0.0
    %132 = vmatprep.subr.mxu0 0.0
    %133 = vmatpush2.xpose.msra.mxu0 0.0
    %134 = vmatprep.subr.mxu0 0.0
    %135 = vmatpush2.xpose.msra.mxu0 0.0
    %136 = vmatprep.subr.mxu0 0.0
    %137 = vmatpush2.xpose.msra.mxu0 0.0
    %138 = vmatprep.subr.mxu0 0.0
    %139 = vmatpush2.xpose.msra.mxu0 0.0
    %140 = vmatprep.subr.mxu0 0.0
    %141 = vmatpush2.xpose.msra.mxu0 0.0
    %142 = vmatprep.subr.mxu0 0.0
    %143 = vmatpush2.xpose.msra.mxu0 0.0
    %144 = vmatprep.subr.mxu0 0.0
    %145 = vmatpush2.xpose.msra.mxu0 0.0
    %146 = vmatprep.subr.mxu0 0.0
    %147 = vmatpush2.xpose.msra.mxu0 0.0
    %148 = vmatprep.subr.mxu0 0.0
    %149 = vmatpush2.xpose.msra.mxu0 0.0
    %150 = vmatprep.subr.mxu0 0.0
    %151 = vmatpush2.xpose.msra.mxu0 0.0
    %152 = vmatprep.subr.mxu0 0.0
    %153 = vmatpush2.xpose.msra.mxu0 0.0
    %154 = vmatprep.subr.mxu0 0.0
    %155 = vmatpush2.xpose.msra.mxu0 0.0
    %156 = vmatprep.subr.mxu0 0.0
    %157 = vmatpush2.xpose.msra.mxu0 0.0
    %158 = vmatprep.subr.mxu0 0.0
    %159 = vmatpush2.xpose.msra.mxu0 0.0
    %160 = vmatprep.mubr.f32.mxu0 0.0
    %161 = vmatmul.mubr.f32.gmra.mxu0 %v93
    %v162 = vpop.f32.mrf.mxu0
    %v163 = vadd.f32 %v95, %v162
    %v164 = vpop.f32.mrf.mxu0
    %165 = vdwg.mxu0
    %v166 = vsub.f32 0.0, %v163
    %v167 = vmul.f32 %v166, 1.442695
    %v168 = vpow.pop %v167
    %v169 = vadd.f32 %v168, 1.0
    %v170 = vrcp.pop %v169
    %vm171 = vcmask 57344
    %172 = vst.msk [vmem:[#allocation3] sm:$0x1] %vm171, %v170
    // Predicated region
    $region22: #{discriminator_forward.1} parent=1 // pred_check
      _
    $region23: #{discriminator_forward.1} parent=1 // pred_check_branch
      %174 = sbr.rel (0) target = $region25
    $region24: #{discriminator_forward.1} parent=1 // pred_region
      %s176 = ssub.s32 16, 16
      %177 = vsyncadd [#allocation4], %s176
      %s179 = sshll.u32 [#allocation3], 4
      %s180 = int_to_ptr.vmem [resolvable:$true] %s179
      %182 = dma.vmem_to_hbm [thread:$0]  %s180, 16, %s5, [#allocation4]
    $region25: #{discriminator_forward.1} parent=1 // pred_fallthru
      _
    // Predicated region
    $region26: #{discriminator_forward.1} parent=1 // pred_check
      _
    $region27: #{discriminator_forward.1} parent=1 // pred_check_branch
      %184 = sbr.rel (0) target = $region29
    $region28: #{discriminator_forward.1} parent=1 // pred_region
      %185 = dma.done [#allocation4], 16
    $region29: #{discriminator_forward.1} parent=1 // pred_fallthru
      _
    %186 = vsyncpa [#allocation4], 1

</llo_original>
